<compile_context>
chip_gen: v5e
topology: v5e:2x2
jax: 0.10.0
libtpu: 0.0.40
codegen_flags: <defaults>
</compile_context>

<pallas_src>
import functools

import jax
import jax.numpy as jnp
from jax import lax
from jax.experimental import pallas as pl
from jax.experimental.pallas import tpu as pltpu

LANE = 128
SUBLANE = 8
MAX_TILE_ROWS = 4096  # (4096,128) f32 = 2 MiB/block; 2 inputs x 2 bufs = 8 MiB VMEM


def _pow_int(x, g: int):
    """Small non-negative integer power as a VPU multiply chain (no EUP)."""
    if g == 0:
        return jnp.ones_like(x)
    out = x
    for _ in range(g - 1):
        out = out * x
    return out


def _focal_kernel(x_ref, t_ref, o_ref, *, gamma, n, tile_elems,
                  steps_per_core, needs_mask, hard_targets):
    c = pl.program_id(0)                    # core-split ("parallel") axis
    i = pl.program_id(1)                    # sequential ("arbitrary") axis
    blk = c * steps_per_core + i            # intended (unclamped) global block

    @pl.when(i == 0)
    def _():
        o_ref[...] = jnp.zeros_like(o_ref)  # per-core resident accumulator

    x = x_ref[...].astype(jnp.float32)
    t = t_ref[...].astype(jnp.float32)

    # Numerically stable BCE-with-logits (matches torch's formulation):
    #   ce = max(x, 0) - x*t + log1p(exp(-|x|))
    s = jnp.exp(-jnp.abs(x))
    ce = jnp.maximum(x, 0.0) - x * t + jnp.log1p(s)
    if hard_targets:
        # Valid only for t in {0,1}:  pt = exp(-ce) = num / (1 + s) with
        # num = 1 where sign(x) agrees with the target, else exp(-|x|).
        # Saves one EUP exp per element (binding unit on v7x).
        num = jnp.where((x >= 0.0) == (t >= 0.5), 1.0, s)
        pt = num / (1.0 + s)
    else:
        pt = jnp.exp(-ce)                   # soft-label-safe path
    one_m_pt = 1.0 - pt
    if float(gamma) == int(gamma) and 0 <= int(gamma) <= 8:
        mod = _pow_int(one_m_pt, int(gamma))   # gamma=2 -> a single VPU square
    else:
        mod = jnp.power(one_m_pt, gamma)       # non-integer gamma fallback
    focal = mod * ce                           # alpha/n applied in the wrapper

    def tile_partial(v):
        # (tile_rows,128) -> (tile_rows//8, 8, 128) -> sum over the major axis:
        # sublane-tile-aligned reshape + pure vreg-vreg adds, no XLU here.
        rows = v.shape[0]
        return v.reshape(rows // SUBLANE, SUBLANE, LANE).sum(axis=0)

    if not needs_mask:
        # Steady state: no mask, no per-step cross-lane reduce.
        o_ref[...] += tile_partial(focal)
    else:
        full = (blk + 1) * tile_elems <= n

        @pl.when(full)
        def _():
            o_ref[...] += tile_partial(focal)

        @pl.when(jnp.logical_not(full))
        def _():
            # Partial / fully-out-of-range block: select (not multiply) on the
            # global element index so OOB garbage cannot propagate.
            ridx = lax.broadcasted_iota(jnp.int32, focal.shape, 0)
            cidx = lax.broadcasted_iota(jnp.int32, focal.shape, 1)
            limit = n - blk * tile_elems        # may be <= 0 for fully-OOB blocks
            valid = (ridx * LANE + cidx) < limit
            o_ref[...] += tile_partial(jnp.where(valid, focal, 0.0))


def focal_loss(pred_logits, target, alpha=1.0, gamma=2.0, hard_targets=False):
    """Pallas implementation of FocalLoss.forward -> scalar mean focal loss."""
    assert pred_logits.shape == target.shape
    n = pred_logits.size
    if n == 0:
        # torch's mean over an empty tensor is NaN; avoid alpha/0 in the scale.
        return jnp.asarray(jnp.nan, dtype=jnp.float32)

    x = pred_logits.reshape(-1)
    t = target.reshape(-1)

    # Pad only to a (8*128)-element multiple so the flat stream is a lane-dense
    # (rows,128) slab with rows % 8 == 0. Zero cost for the common case where
    # n is already a multiple of 1024; padded elements are masked in-kernel.
    pad = (-n) % (SUBLANE * LANE)
    if pad:
        x = jnp.pad(x, (0, pad))
        t = jnp.pad(t, (0, pad))
    rows = (n + pad) // LANE
    x = x.reshape(rows, LANE)
    t = t.reshape(rows, LANE)

    tile_rows = min(MAX_TILE_ROWS, rows)       # multiple of 8 by construction
    tile_elems = tile_rows * LANE
    num_blocks = pl.cdiv(rows, tile_rows)
    num_par = 2 if num_blocks >= 2 else 1      # 2-TC split (v7x); harmless on 1-TC
    steps_per_core = pl.cdiv(num_blocks, num_par)
    needs_mask = (num_par * steps_per_core * tile_elems) != n

    def in_map(c, i):
        # Clamp so rounded-up grids never issue fully out-of-bounds DMAs; the
        # in-kernel mask (which uses the unclamped index) zeroes re-read data.
        return (jnp.minimum(c * steps_per_core + i, num_blocks - 1), 0)

    kernel = functools.partial(
        _focal_kernel,
        gamma=float(gamma),
        n=int(n),
        tile_elems=int(tile_elems),
        steps_per_core=int(steps_per_core),
        needs_mask=bool(needs_mask),
        hard_targets=bool(hard_targets),
    )

    partials = pl.pallas_call(
        kernel,
        out_shape=jax.ShapeDtypeStruct((num_par * SUBLANE, LANE), jnp.float32),
        grid_spec=pltpu.PrefetchScalarGridSpec(
            num_scalar_prefetch=0,
            grid=(num_par, steps_per_core),
            in_specs=[
                pl.BlockSpec((tile_rows, LANE), in_map),
                pl.BlockSpec((tile_rows, LANE), in_map),
            ],
            out_specs=pl.BlockSpec((SUBLANE, LANE), lambda c, i: (c, 0)),
        ),
        compiler_params=pltpu.CompilerParams(
            dimension_semantics=("parallel", "arbitrary"),
        ),
    )(x, t)

    # Single tiny cross-lane reduce over (num_par*8, 128) + (alpha / n) scale.
    return jnp.sum(partials) * (float(alpha) / float(n))


def _focal_loss_ref(pred_logits, target, alpha=1.0, gamma=2.0):
    x = pred_logits.astype(jnp.float32)
    t = target.astype(jnp.float32)
    ce = jnp.maximum(x, 0.0) - x * t + jnp.log1p(jnp.exp(-jnp.abs(x)))
    pt = jnp.exp(-ce)
    return jnp.mean(alpha * (1.0 - pt) ** gamma * ce)


if __name__ == "__main__":
    key = jax.random.PRNGKey(0)
    k1, k2 = jax.random.split(key)
    # Segmentation-style shapes: batch=2, channels=4, spatial=16x16 (NCHW).
    pred_logits = jax.random.normal(k1, (2, 4, 16, 16), dtype=jnp.float32) * 2.0
    target = (jax.random.uniform(k2, (2, 4, 16, 16)) > 0.5).astype(jnp.float32)

    ref = _focal_loss_ref(pred_logits, target, alpha=1.0, gamma=2.0)

    # Default (soft-label-safe) path.
    loss = focal_loss(pred_logits, target, alpha=1.0, gamma=2.0)
    loss = jax.block_until_ready(loss)
    assert jnp.allclose(loss, ref, rtol=1e-5, atol=1e-6), (loss, ref)

    # Hard {0,1}-target path (2 transcendentals/element instead of 3).
    loss_hard = focal_loss(pred_logits, target, alpha=1.0, gamma=2.0,
                           hard_targets=True)
    loss_hard = jax.block_until_ready(loss_hard)
    assert jnp.allclose(loss_hard, ref, rtol=1e-4, atol=1e-6), (loss_hard, ref)

    print("KERNEL_OK")
</pallas_src>

<mosaic_0001>
module attributes {stable_mosaic.version = 11 : i64} {
  func.func @_focal_kernel(%arg0: i32, %arg1: i32, %arg2: memref<16x128xf32, #tpu.memory_space<vmem>>, %arg3: memref<16x128xf32, #tpu.memory_space<vmem>>, %arg4: memref<8x128xf32, #tpu.memory_space<vmem>>) attributes {dimension_semantics = [#tpu.dimension_semantics<parallel>, #tpu.dimension_semantics<arbitrary>], iteration_bounds = array<i64: 1, 1>, scalar_prefetch = 0 : i64, scratch_operands = 0 : i64, tpu.core_type = #tpu.core_type<tc>, window_params = [{transform_indices = @transform_0, window_bounds = array<i64: 16, 128>}, {transform_indices = @transform_1, window_bounds = array<i64: 16, 128>}, {transform_indices = @transform_2, window_bounds = array<i64: 8, 128>}]} {
    %c0_i32 = arith.constant 0 : i32
    %0 = arith.cmpi eq, %arg1, %c0_i32 : i32
    %1 = arith.extui %0 : i1 to i32
    %c0_i32_0 = arith.constant 0 : i32
    %2 = arith.cmpi ne, %1, %c0_i32_0 : i32
    scf.if %2 {
      %cst_12 = arith.constant 0.000000e+00 : f32
      %27 = vector.broadcast %cst_12 : f32 to vector<8x128xf32>
      %c0_13 = arith.constant 0 : index
      %c0_14 = arith.constant 0 : index
      %28 = vector.load %arg4[%c0_13, %c0_14] : memref<8x128xf32, #tpu.memory_space<vmem>>, vector<8x128xf32>
      tpu.vector_store %arg4[%c0_13, %c0_14], %27 {strides = array<i32>} : memref<8x128xf32, #tpu.memory_space<vmem>>, vector<8x128xf32>,
    } else {
    }
    %c0 = arith.constant 0 : index
    %c0_1 = arith.constant 0 : index
    %3 = vector.load %arg2[%c0, %c0_1] : memref<16x128xf32, #tpu.memory_space<vmem>>, vector<16x128xf32>
    %c0_2 = arith.constant 0 : index
    %c0_3 = arith.constant 0 : index
    %4 = vector.load %arg3[%c0_2, %c0_3] : memref<16x128xf32, #tpu.memory_space<vmem>>, vector<16x128xf32>
    %5 = math.absf %3 : vector<16x128xf32>
    %cst = arith.constant 0.000000e+00 : f32
    %6 = vector.broadcast %cst : f32 to vector<16x128xf32>
    %7 = arith.subf %6, %5 : vector<16x128xf32>
    %8 = math.exp %7 : vector<16x128xf32>
    %cst_4 = arith.constant 0.000000e+00 : f32
    %9 = vector.broadcast %cst_4 : f32 to vector<16x128xf32>
    %10 = arith.maximumf %3, %9 : vector<16x128xf32>
    %11 = arith.mulf %3, %4 : vector<16x128xf32>
    %12 = arith.subf %10, %11 : vector<16x128xf32>
    %13 = math.log1p %8 : vector<16x128xf32>
    %14 = arith.addf %12, %13 : vector<16x128xf32>
    %cst_5 = arith.constant 0.000000e+00 : f32
    %15 = vector.broadcast %cst_5 : f32 to vector<16x128xf32>
    %16 = arith.subf %15, %14 : vector<16x128xf32>
    %17 = math.exp %16 : vector<16x128xf32>
    %cst_6 = arith.constant 1.000000e+00 : f32
    %18 = vector.broadcast %cst_6 : f32 to vector<16x128xf32>
    %19 = arith.subf %18, %17 : vector<16x128xf32>
    %20 = arith.mulf %19, %19 : vector<16x128xf32>
    %21 = arith.mulf %20, %14 : vector<16x128xf32>
    %c0_7 = arith.constant 0 : index
    %c0_8 = arith.constant 0 : index
    %22 = vector.load %arg4[%c0_7, %c0_8] : memref<8x128xf32, #tpu.memory_space<vmem>>, vector<8x128xf32>
    %23 = vector.shape_cast %21 : vector<16x128xf32> to vector<2x8x128xf32>
    %cst_9 = arith.constant dense<0.000000e+00> : vector<8x128xf32>
    %24 = vector.multi_reduction <add>, %23, %cst_9 [0] : vector<2x8x128xf32> to vector<8x128xf32>
    %25 = arith.addf %22, %24 : vector<8x128xf32>
    %c0_10 = arith.constant 0 : index
    %c0_11 = arith.constant 0 : index
    %26 = vector.load %arg4[%c0_10, %c0_11] : memref<8x128xf32, #tpu.memory_space<vmem>>, vector<8x128xf32>
    tpu.vector_store %arg4[%c0_10, %c0_11], %25 {strides = array<i32>} : memref<8x128xf32, #tpu.memory_space<vmem>>, vector<8x128xf32>,
    return
  }
  func.func @transform_0(%arg0: i32, %arg1: i32) -> (i32, i32) {
    %c1_i32 = arith.constant 1 : i32
    %0 = arith.muli %arg0, %c1_i32 : i32
    %1 = arith.addi %0, %arg1 : i32
    %c0_i32 = arith.constant 0 : i32
    %2 = arith.minsi %1, %c0_i32 : i32
    %c0_i32_0 = arith.constant 0 : i32
    %c0_i32_1 = arith.constant 0 : i32
    return %2, %c0_i32_0 : i32, i32
  }
  func.func @transform_1(%arg0: i32, %arg1: i32) -> (i32, i32) {
    %c1_i32 = arith.constant 1 : i32
    %0 = arith.muli %arg0, %c1_i32 : i32
    %1 = arith.addi %0, %arg1 : i32
    %c0_i32 = arith.constant 0 : i32
    %2 = arith.minsi %1, %c0_i32 : i32
    %c0_i32_0 = arith.constant 0 : i32
    %c0_i32_1 = arith.constant 0 : i32
    return %2, %c0_i32_0 : i32, i32
  }
  func.func @transform_2(%arg0: i32, %arg1: i32) -> (i32, i32) {
    %c0_i32 = arith.constant 0 : i32
    %c0_i32_0 = arith.constant 0 : i32
    return %arg0, %c0_i32 : i32, i32
  }
}

</mosaic_0001>

<llo_original>
// kernel: tpu_custom_call.1
$region0: #{tpu_custom_call.1}
  #allocation0 [shape = 'u32[]', space=smem, size = 0x4, offset = 0x4, fixed_abs, tag = 'smem constant byte address 0x4 - core index']
  #allocation1 [shape = 'u32[72,128]{1,0:T(1,128)}', space=vmem, size = 0x9000, scoped, tag = 'internal scratch']
  %s0 = inlined_call_operand.hbm [shape: f32[16,128], index: 0, kind: input, shape index: {}]
  %s1 = inlined_call_operand.hbm [shape: f32[16,128], index: 1, kind: input, shape index: {}]
  %s2 = inlined_call_operand.hbm [shape: f32[8,128], index: 2, kind: output, shape index: {}]
  %s3 = sld [smem:[#allocation0]]
  $region30: #{tpu_custom_call.1} parent=0
    _
  %s5 = ssub.s32 1, %s3
  %s6 = scalar_select 0, %s5, %s3
  $region1: #{tpu_custom_call.1} parent=0
    #allocation2 [shape = 'u8[8192]{0}', space=vmem, size = 0x2000, scoped, tag = 'input window, operand 0, single buffered']
    #allocation3 [shape = 's32[1]{0}', space=sflag, size = 0x4, scoped, tag = 'scoped memory for tpu_custom_call.1']
    #allocation4 [shape = 's32[1]{0}', space=sflag, size = 0x4, scoped, tag = 'scoped memory for tpu_custom_call.1']
    #allocation5 [shape = 'u8[8192]{0}', space=vmem, size = 0x2000, scoped, tag = 'input window, operand 1, single buffered']
    #allocation6 [shape = 's32[1]{0}', space=sflag, size = 0x4, scoped, tag = 'scoped memory for tpu_custom_call.1']
    #allocation7 [shape = 'u8[4096]{0}', space=vmem, size = 0x1000, scoped, tag = 'output window, operand 0, single buffered']
    %7 = vsyncpa [#allocation3], 0
    %8 = vsyncpa [#allocation6], 0
    %9 = vsyncpa [#allocation4], 0
    // Predicated region
    $region2: #{tpu_custom_call.1} parent=1 // pred_check
      _
    $region3: #{tpu_custom_call.1} parent=1 // pred_check_branch
      %11 = sbr.rel (0) target = $region5
    $region4: #{tpu_custom_call.1} parent=1 // pred_region
      %s12 = sadd.s32 0, 0
      %p13 = scmp.lt.s32.totalorder %s12, 0
      %s14 = scalar_select %p13, %s12, 0
      %s15 = smul.u32 2, %s14
      %17 = vsyncadd [#allocation3], 0
      %s18 = smul.addr %s15, 8
      %s19 = scalar_lea.hbm %s0, %s18
      %s20 = sshll.u32 %s19, 4
      %s21 = int_to_ptr.hbm [resolvable:$true] %s20
      %s22 = sshll.u32 [#allocation2], 4
      %s23 = int_to_ptr.vmem [resolvable:$true] %s22
      %28 = dma.hbm_to_vmem [thread:$0]  %s21, 256, %s23, [#allocation3], 128, 128, 8
    $region5: #{tpu_custom_call.1} parent=1 // pred_fallthru
      _
    // Predicated region
    $region6: #{tpu_custom_call.1} parent=1 // pred_check
      _
    $region7: #{tpu_custom_call.1} parent=1 // pred_check_branch
      %30 = sbr.rel (0) target = $region9
    $region8: #{tpu_custom_call.1} parent=1 // pred_region
      %s31 = sadd.s32 0, 0
      %p32 = scmp.lt.s32.totalorder %s31, 0
      %s33 = scalar_select %p32, %s31, 0
      %s34 = smul.u32 2, %s33
      %36 = vsyncadd [#allocation6], 0
      %s37 = smul.addr %s34, 8
      %s38 = scalar_lea.hbm %s1, %s37
      %s39 = sshll.u32 %s38, 4
      %s40 = int_to_ptr.hbm [resolvable:$true] %s39
      %s41 = sshll.u32 [#allocation5], 4
      %s42 = int_to_ptr.vmem [resolvable:$true] %s41
      %47 = dma.hbm_to_vmem [thread:$0]  %s40, 256, %s42, [#allocation6], 128, 128, 8
    $region9: #{tpu_custom_call.1} parent=1 // pred_fallthru
      _
    // Predicated region
    $region10: #{tpu_custom_call.1} parent=1 // pred_check
      _
    $region11: #{tpu_custom_call.1} parent=1 // pred_check_branch
      %49 = sbr.rel (0) target = $region13
    $region12: #{tpu_custom_call.1} parent=1 // pred_region
      %51 = dma.done [#allocation3], 256
    $region13: #{tpu_custom_call.1} parent=1 // pred_fallthru
      _
    // Predicated region
    $region14: #{tpu_custom_call.1} parent=1 // pred_check
      _
    $region15: #{tpu_custom_call.1} parent=1 // pred_check_branch
      %53 = sbr.rel (0) target = $region17
    $region16: #{tpu_custom_call.1} parent=1 // pred_region
      %55 = dma.done [#allocation6], 256
    $region17: #{tpu_custom_call.1} parent=1 // pred_fallthru
      _
    %s56 = sadd.s32 0, 0
    %p57 = scmp.lt.s32.totalorder %s56, 0
    %s58 = scalar_select %p57, %s56, 0
    %s59 = smul.u32 2, %s58
    %s60 = sadd.s32 0, 0
    %p61 = scmp.lt.s32.totalorder %s60, 0
    %s62 = scalar_select %p61, %s60, 0
    %s63 = smul.u32 2, %s62
    %p64 = scmp.eq.s32.totalorder 0, 0
    // Predicated region
    $region18: #{tpu_custom_call.1} parent=1 // pred_check
      %p65 = pneg %p64
    $region19: #{tpu_custom_call.1} parent=1 // pred_check_branch
      %67 = sbr.rel (%p65) target = $region21
    $region20: #{tpu_custom_call.1} parent=1 // pred_region
      %68 = vst [vmem:[#allocation7] sm:$0xff] 0.0
    $region21: #{tpu_custom_call.1} parent=1 // pred_fallthru
      _
    %v69 = vld [vmem:[#allocation2] sm:$0xff]
    %v70 = vld [vmem:[#allocation2 + $0x8] sm:$0xff]
    %v71 = vld [vmem:[#allocation5] sm:$0xff]
    %v72 = vld [vmem:[#allocation5 + $0x8] sm:$0xff]
    %v73 = vand.u32 2147483647, %v69
    %v74 = vand.u32 2147483647, %v70
    %v75 = vsub.f32 0.0, %v73
    %v76 = vsub.f32 0.0, %v74
    %v77 = vmul.f32 %v75, 1.442695
    %v78 = vpow.pop %v77
    %v79 = vmul.f32 %v76, 1.442695
    %v80 = vpow.pop %v79
    %v81 = vmax.f32 %v69, 0.0
    %v82 = vmax.f32 %v70, 0.0
    %v83 = vmul.f32 %v69, %v71
    %v84 = vmul.f32 %v70, %v72
    %v85 = vsub.f32 %v81, %v83
    %v86 = vsub.f32 %v82, %v84
    %v87 = vadd.f32 %v78, 1.0
    %v88 = vlog2.pop %v87
    %v89 = vmul.f32 %v88, 0.6931472
    %v90 = vmul.f32 -0.5, %v78
    %v91 = vadd.f32 %v90, 1.0
    %v92 = vmul.f32 %v91, %v78
    %v93 = vand.u32 2147483647, %v78
    %vm94 = vcmp.lt.f32.partialorder %v93, 0.0004427343
    %v95 = vsel %vm94, %v92, %v89
    %v96 = vadd.f32 %v80, 1.0
    %v97 = vlog2.pop %v96
    %v98 = vmul.f32 %v97, 0.6931472
    %v99 = vmul.f32 -0.5, %v80
    %v100 = vadd.f32 %v99, 1.0
    %v101 = vmul.f32 %v100, %v80
    %v102 = vand.u32 2147483647, %v80
    %vm103 = vcmp.lt.f32.partialorder %v102, 0.0004427343
    %v104 = vsel %vm103, %v101, %v98
    %v105 = vadd.f32 %v85, %v95
    %v106 = vadd.f32 %v86, %v104
    %v107 = vsub.f32 0.0, %v105
    %v108 = vsub.f32 0.0, %v106
    %v109 = vmul.f32 %v107, 1.442695
    %v110 = vpow.pop %v109
    %v111 = vmul.f32 %v108, 1.442695
    %v112 = vpow.pop %v111
    %v113 = vsub.f32 1.0, %v110
    %v114 = vsub.f32 1.0, %v112
    %v115 = vmul.f32 %v113, %v113
    %v116 = vmul.f32 %v114, %v114
    %v117 = vmul.f32 %v115, %v105
    %v118 = vmul.f32 %v116, %v106
    %v119 = vld [vmem:[#allocation7] sm:$0xff]
    %v120 = vadd.f32 %v117, %v118
    %v121 = vadd.f32 %v119, %v120
    %122 = vst [vmem:[#allocation7] sm:$0xff] %v121
    // Predicated region
    $region22: #{tpu_custom_call.1} parent=1 // pred_check
      _
    $region23: #{tpu_custom_call.1} parent=1 // pred_check_branch
      %124 = sbr.rel (0) target = $region25
    $region24: #{tpu_custom_call.1} parent=1 // pred_region
      %126 = vsyncadd [#allocation4], 0
      %s128 = sshll.u32 [#allocation7], 4
      %s129 = int_to_ptr.vmem [resolvable:$true] %s128
      %s130 = sshll.u32 %s2, 4
      %s131 = int_to_ptr.hbm [resolvable:$true] %s130
      %133 = dma.vmem_to_hbm [thread:$0]  %s129, 128, %s131, [#allocation4]
    $region25: #{tpu_custom_call.1} parent=1 // pred_fallthru
      _
    // Predicated region
    $region26: #{tpu_custom_call.1} parent=1 // pred_check
      _
    $region27: #{tpu_custom_call.1} parent=1 // pred_check_branch
      %135 = sbr.rel (0) target = $region29
    $region28: #{tpu_custom_call.1} parent=1 // pred_region
      %137 = dma.done [#allocation4], 128
    $region29: #{tpu_custom_call.1} parent=1 // pred_fallthru
      _
    %138 = vsyncpa [#allocation3], 1
    %139 = vsyncpa [#allocation6], 1
    %140 = vsyncpa [#allocation4], 1

</llo_original>
